<compile_context>
chip_gen: v5e
topology: v5e:2x2
jax: 0.10.0
libtpu: 0.0.40
codegen_flags: <defaults>
</compile_context>

<pallas_src>
import functools

import jax
import jax.numpy as jnp
from jax.experimental import pallas as pl
from jax.experimental.pallas import tpu as pltpu


def _device_kind() -> str:
    try:
        devs = jax.devices()
        return devs[0].device_kind.lower() if devs else ""
    except Exception:  # pragma: no cover - defensive; detection is perf-only
        return ""


_KIND = _device_kind()
# v5e has no bf16 VPU and a 16 MiB default scoped-VMEM limit; detection failure
# only affects performance, never correctness.
_IS_V5E = ("v5 lite" in _KIND) or ("v5e" in _KIND) or ("v5litepod" in _KIND)


def ikmlp_kernel(x_ref, w1_ref, b1_ref, w2_ref, b2_ref, w3_ref, b3_ref, o_ref,
                 *, epi_dtype):
    """One (tm, 3) batch tile -> (tm, 4) output tile, batch-major end to end.

    x_ref : (tm, 3)  f32        w1_ref: (3, 64)    f32   b1_ref: (1, 64)  f32
    w2_ref: (64, 128) bf16/f32                           b2_ref: (1, 128) f32
    w3_ref: (128, 128) bf16/f32 (cols 4..127 are zero)   b3_ref: (1, 4)   f32
    o_ref : (tm, 4)  f32
    """
    x = x_ref[...]          # (tm, 3)  f32
    w1 = w1_ref[...]        # (3, 64)  f32

    # ---- layer 1: K = 3 contraction -> three VPU broadcast FMAs (MXU stays free) ----
    a1 = (x[:, 0:1] * w1[0:1, :]
          + x[:, 1:2] * w1[1:2, :]
          + x[:, 2:3] * w1[2:3, :]
          + b1_ref[...])
    h1 = jnp.maximum(a1, 0.0).astype(w2_ref.dtype)                 # (tm, 64)

    # ---- layer 2: MXU matmul, f32 accumulate; epilogue in epi_dtype (bf16 on v6e/v7x) ----
    a2 = jnp.dot(h1, w2_ref[...], preferred_element_type=jnp.float32)   # (tm, 128) f32
    h2 = jnp.maximum(a2.astype(epi_dtype) + b2_ref[...].astype(epi_dtype), 0)
    h2 = h2.astype(w3_ref.dtype)

    # ---- layer 3: MXU matmul against lane-padded (128, 128) weights ----
    a3 = jnp.dot(h2, w3_ref[...], preferred_element_type=jnp.float32)   # (tm, 128) f32
    out = a3[:, 0:4] + b3_ref[...]                                       # (tm, 4)
    o_ref[...] = out.astype(o_ref.dtype)


def _pick_tile(B, cap):
    """Batch tile + grid length.  Single step for small B; even grid when tiled."""
    if B <= cap:
        return B, 1                       # block == full array dim is always legal
    g = -(-B // cap)
    if g % 2 == 1:
        g += 1                            # even grid -> both v7x TensorCores busy
    tm = -(-B // g)
    tm = -(-tm // 8) * 8                  # second-minor block dim: multiple of 8
    g = -(-B // tm)
    return tm, g


def ikmlp_forward(x, params, *, tm=None, use_bf16=True, bf16_epilogue=None):
    """x: (B, 3) float32 -> (B, 4) float32.  params: PyTorch-layout (out, in) / (out,)."""
    B, Din = x.shape
    assert Din == params["w1"].shape[1]
    Dout = params["w3"].shape[0]

    mxu_dtype = jnp.bfloat16 if use_bf16 else jnp.float32
    if bf16_epilogue is None:
        bf16_epilogue = use_bf16 and not _IS_V5E      # bf16 VPU on v6e/v7x only
    epi_dtype = jnp.bfloat16 if (use_bf16 and bf16_epilogue) else jnp.float32

    # Weight/bias relayout in the wrapper is a one-time <65 KB op (negligible);
    # the big (B, ·) activations are never transposed or copied outside the kernel.
    w1_t = params["w1"].T.astype(jnp.float32)                    # (3, 64)
    b1_r = params["b1"].reshape(1, -1).astype(jnp.float32)       # (1, 64)
    w2_t = params["w2"].T.astype(mxu_dtype)                      # (64, 128)
    b2_r = params["b2"].reshape(1, -1).astype(jnp.float32)       # (1, 128)
    w3_t = params["w3"].T.astype(mxu_dtype)                      # (128, 4)
    w3_p = jnp.zeros((w3_t.shape[0], 128), mxu_dtype).at[:, :Dout].set(w3_t)
    b3_r = params["b3"].reshape(1, -1).astype(jnp.float32)       # (1, 4)

    if tm is None:
        cap = 2048 if _IS_V5E else 4096
        tm, g = _pick_tile(B, cap)
    else:
        g = pl.cdiv(B, tm)
    grid = (g,)

    def resident(a):
        # Grid-invariant weight/bias blocks: fetched once, stay VMEM-resident.
        return pl.BlockSpec(a.shape, lambda i: (0, 0))

    # Explicit scoped-VMEM budget (review): ~5 KB of live VMEM per batch row with
    # the lane-padded (tm,3)/(tm,4) I/O tiles; give ~1.5x headroom, cap at 40 MiB
    # (safe under v7x's 64 MiB/TC and v5e/v6e's 128 MiB physical).
    vmem_bytes = min(40 * 1024 * 1024, max(4 * 1024 * 1024, 8 * 1024 * int(tm)))

    flops = 2 * B * (3 * 64 + 64 * 128 + 128 * 4)
    param_bytes = sum(int(a.size) * a.dtype.itemsize
                      for a in (w1_t, b1_r, w2_t, b2_r, w3_p, b3_r))
    bytes_accessed = int(x.size) * x.dtype.itemsize + B * Dout * 4 + param_bytes

    kernel = functools.partial(ikmlp_kernel, epi_dtype=epi_dtype)

    out = pl.pallas_call(
        kernel,
        out_shape=jax.ShapeDtypeStruct((B, Dout), x.dtype),
        grid=grid,
        in_specs=[
            pl.BlockSpec((tm, Din), lambda i: (i, 0)),    # x tile, batch-major, 1 DMA
            resident(w1_t), resident(b1_r),
            resident(w2_t), resident(b2_r),
            resident(w3_p), resident(b3_r),
        ],
        out_specs=pl.BlockSpec((tm, Dout), lambda i: (i, 0)),
        compiler_params=pltpu.CompilerParams(
            dimension_semantics=("parallel",),            # independent batch tiles
            vmem_limit_bytes=int(vmem_bytes),
        ),
        cost_estimate=pl.CostEstimate(
            flops=flops, transcendentals=0, bytes_accessed=int(bytes_accessed)),
    )(x, w1_t, b1_r, w2_t, b2_r, w3_p, b3_r)

    return out


def init_ikmlp_params(key):
    """PyTorch nn.Linear-style init: W (out, in), b (out,), uniform +-1/sqrt(fan_in)."""
    def linear(k, fan_in, fan_out):
        kw, kb = jax.random.split(k)
        bound = 1.0 / (fan_in ** 0.5)
        w = jax.random.uniform(kw, (fan_out, fan_in), jnp.float32, -bound, bound)
        b = jax.random.uniform(kb, (fan_out,), jnp.float32, -bound, bound)
        return w, b

    k1, k2, k3 = jax.random.split(key, 3)
    w1, b1 = linear(k1, 3, 64)
    w2, b2 = linear(k2, 64, 128)
    w3, b3 = linear(k3, 128, 4)
    return {"w1": w1, "b1": b1, "w2": w2, "b2": b2, "w3": w3, "b3": b3}


def ikmlp_reference(x, params):
    h1 = jnp.maximum(x @ params["w1"].T + params["b1"], 0.0)
    h2 = jnp.maximum(h1 @ params["w2"].T + params["b2"], 0.0)
    return h2 @ params["w3"].T + params["b3"]


if __name__ == "__main__":
    key = jax.random.PRNGKey(0)
    kp, kx = jax.random.split(key)
    params = init_ikmlp_params(kp)

    B = 256  # small batch of 3-D end-effector targets -> single grid step
    x = jax.random.uniform(kx, (B, 3), jnp.float32, -1.0, 1.0)
    ref = ikmlp_reference(x, params)

    # Default path: bf16 MXU operands (+ bf16 epilogue on v6e/v7x), f32 accumulate.
    out = jax.block_until_ready(ikmlp_forward(x, params))
    assert out.shape == (B, 4)
    assert jnp.allclose(out, ref, atol=6e-2, rtol=6e-2), \
        float(jnp.max(jnp.abs(out - ref)))

    # Validation-only f32 path must track the reference tightly.
    out_f32 = jax.block_until_ready(ikmlp_forward(x, params, use_bf16=False))
    assert jnp.allclose(out_f32, ref, atol=1e-4, rtol=1e-4), \
        float(jnp.max(jnp.abs(out_f32 - ref)))

    # Exercise the multi-step grid + partial last block at small shapes.
    B2 = 250
    x2 = jax.random.uniform(jax.random.PRNGKey(1), (B2, 3), jnp.float32, -1.0, 1.0)
    out2 = jax.block_until_ready(ikmlp_forward(x2, params, tm=64))
    ref2 = ikmlp_reference(x2, params)
    assert out2.shape == (B2, 4)
    assert jnp.allclose(out2, ref2, atol=6e-2, rtol=6e-2), \
        float(jnp.max(jnp.abs(out2 - ref2)))

    print("KERNEL_OK")
</pallas_src>

<mosaic_0001>
module attributes {stable_mosaic.version = 11 : i64} {
  func.func @ikmlp_kernel(%arg0: i32, %arg1: memref<256x3xf32, #tpu.memory_space<vmem>>, %arg2: memref<3x64xf32, #tpu.memory_space<vmem>>, %arg3: memref<1x64xf32, #tpu.memory_space<vmem>>, %arg4: memref<64x128xbf16, #tpu.memory_space<vmem>>, %arg5: memref<1x128xf32, #tpu.memory_space<vmem>>, %arg6: memref<128x128xbf16, #tpu.memory_space<vmem>>, %arg7: memref<1x4xf32, #tpu.memory_space<vmem>>, %arg8: memref<256x4xf32, #tpu.memory_space<vmem>>) attributes {dimension_semantics = [#tpu.dimension_semantics<parallel>], iteration_bounds = array<i64: 1>, scalar_prefetch = 0 : i64, scratch_operands = 0 : i64, tpu.core_type = #tpu.core_type<tc>, window_params = [{transform_indices = @transform_0, window_bounds = array<i64: 256, 3>}, {pipeline_mode = #tpu.pipeline_mode<synchronous>, transform_indices = @transform_1, window_bounds = array<i64: 3, 64>}, {pipeline_mode = #tpu.pipeline_mode<synchronous>, transform_indices = @transform_2, window_bounds = array<i64: 1, 64>}, {pipeline_mode = #tpu.pipeline_mode<synchronous>, transform_indices = @transform_3, window_bounds = array<i64: 64, 128>}, {pipeline_mode = #tpu.pipeline_mode<synchronous>, transform_indices = @transform_4, window_bounds = array<i64: 1, 128>}, {pipeline_mode = #tpu.pipeline_mode<synchronous>, transform_indices = @transform_5, window_bounds = array<i64: 128, 128>}, {pipeline_mode = #tpu.pipeline_mode<synchronous>, transform_indices = @transform_6, window_bounds = array<i64: 1, 4>}, {transform_indices = @transform_7, window_bounds = array<i64: 256, 4>}]} {
    %c0 = arith.constant 0 : index
    %c0_0 = arith.constant 0 : index
    %0 = vector.load %arg1[%c0, %c0_0] : memref<256x3xf32, #tpu.memory_space<vmem>>, vector<256x3xf32>
    %c0_1 = arith.constant 0 : index
    %c0_2 = arith.constant 0 : index
    %1 = vector.load %arg2[%c0_1, %c0_2] : memref<3x64xf32, #tpu.memory_space<vmem>>, vector<3x64xf32>
    %2 = vector.extract_strided_slice %0 {offsets = [0, 0], sizes = [256, 1], strides = [1, 1]} : vector<256x3xf32> to vector<256x1xf32>
    %3 = vector.extract_strided_slice %1 {offsets = [0, 0], sizes = [1, 64], strides = [1, 1]} : vector<3x64xf32> to vector<1x64xf32>
    %4 = vector.broadcast %2 : vector<256x1xf32> to vector<256x64xf32>
    %5 = vector.broadcast %3 : vector<1x64xf32> to vector<256x64xf32>
    %6 = arith.mulf %4, %5 : vector<256x64xf32>
    %7 = vector.extract_strided_slice %0 {offsets = [0, 1], sizes = [256, 1], strides = [1, 1]} : vector<256x3xf32> to vector<256x1xf32>
    %8 = vector.extract_strided_slice %1 {offsets = [1, 0], sizes = [1, 64], strides = [1, 1]} : vector<3x64xf32> to vector<1x64xf32>
    %9 = vector.broadcast %7 : vector<256x1xf32> to vector<256x64xf32>
    %10 = vector.broadcast %8 : vector<1x64xf32> to vector<256x64xf32>
    %11 = arith.mulf %9, %10 : vector<256x64xf32>
    %12 = arith.addf %6, %11 : vector<256x64xf32>
    %13 = vector.extract_strided_slice %0 {offsets = [0, 2], sizes = [256, 1], strides = [1, 1]} : vector<256x3xf32> to vector<256x1xf32>
    %14 = vector.extract_strided_slice %1 {offsets = [2, 0], sizes = [1, 64], strides = [1, 1]} : vector<3x64xf32> to vector<1x64xf32>
    %15 = vector.broadcast %13 : vector<256x1xf32> to vector<256x64xf32>
    %16 = vector.broadcast %14 : vector<1x64xf32> to vector<256x64xf32>
    %17 = arith.mulf %15, %16 : vector<256x64xf32>
    %18 = arith.addf %12, %17 : vector<256x64xf32>
    %c0_3 = arith.constant 0 : index
    %c0_4 = arith.constant 0 : index
    %19 = vector.load %arg3[%c0_3, %c0_4] : memref<1x64xf32, #tpu.memory_space<vmem>>, vector<1x64xf32>
    %20 = vector.broadcast %19 : vector<1x64xf32> to vector<256x64xf32>
    %21 = arith.addf %18, %20 : vector<256x64xf32>
    %cst = arith.constant 0.000000e+00 : f32
    %22 = vector.broadcast %cst : f32 to vector<256x64xf32>
    %23 = arith.maximumf %21, %22 : vector<256x64xf32>
    %24 = arith.truncf %23 : vector<256x64xf32> to vector<256x64xbf16>
    %c0_5 = arith.constant 0 : index
    %c0_6 = arith.constant 0 : index
    %25 = vector.load %arg4[%c0_5, %c0_6] : memref<64x128xbf16, #tpu.memory_space<vmem>>, vector<64x128xbf16>
    %cst_7 = arith.constant dense<0.000000e+00> : vector<256x128xf32>
    %26 = tpu.matmul %24, %25, %cst_7 {dimension_numbers = #tpu.dot_dimension_numbers<[1], [0], [0], [1], [0, 0, 1, 1], [], []>} : vector<256x64xbf16>, vector<64x128xbf16>, vector<256x128xf32> -> vector<256x128xf32>
    %27 = arith.truncf %26 : vector<256x128xf32> to vector<256x128xbf16>
    %c0_8 = arith.constant 0 : index
    %c0_9 = arith.constant 0 : index
    %28 = vector.load %arg5[%c0_8, %c0_9] : memref<1x128xf32, #tpu.memory_space<vmem>>, vector<1x128xf32>
    %29 = arith.truncf %28 : vector<1x128xf32> to vector<1x128xbf16>
    %30 = vector.broadcast %29 : vector<1x128xbf16> to vector<256x128xbf16>
    %31 = arith.addf %27, %30 : vector<256x128xbf16>
    %cst_10 = arith.constant 0.000000e+00 : bf16
    %32 = vector.broadcast %cst_10 : bf16 to vector<256x128xbf16>
    %33 = arith.maximumf %31, %32 : vector<256x128xbf16>
    %c0_11 = arith.constant 0 : index
    %c0_12 = arith.constant 0 : index
    %34 = vector.load %arg6[%c0_11, %c0_12] : memref<128x128xbf16, #tpu.memory_space<vmem>>, vector<128x128xbf16>
    %cst_13 = arith.constant dense<0.000000e+00> : vector<256x128xf32>
    %35 = tpu.matmul %33, %34, %cst_13 {dimension_numbers = #tpu.dot_dimension_numbers<[1], [0], [0], [1], [0, 0, 1, 1], [], []>} : vector<256x128xbf16>, vector<128x128xbf16>, vector<256x128xf32> -> vector<256x128xf32>
    %36 = vector.extract_strided_slice %35 {offsets = [0, 0], sizes = [256, 4], strides = [1, 1]} : vector<256x128xf32> to vector<256x4xf32>
    %c0_14 = arith.constant 0 : index
    %c0_15 = arith.constant 0 : index
    %37 = vector.load %arg7[%c0_14, %c0_15] : memref<1x4xf32, #tpu.memory_space<vmem>>, vector<1x4xf32>
    %38 = vector.broadcast %37 : vector<1x4xf32> to vector<256x4xf32>
    %39 = arith.addf %36, %38 : vector<256x4xf32>
    %c0_16 = arith.constant 0 : index
    %c0_17 = arith.constant 0 : index
    %40 = vector.load %arg8[%c0_16, %c0_17] : memref<256x4xf32, #tpu.memory_space<vmem>>, vector<256x4xf32>
    tpu.vector_store %arg8[%c0_16, %c0_17], %39 {strides = array<i32>} : memref<256x4xf32, #tpu.memory_space<vmem>>, vector<256x4xf32>,
    return
  }
  func.func @transform_0(%arg0: i32) -> (i32, i32) {
    %c0_i32 = arith.constant 0 : i32
    %c0_i32_0 = arith.constant 0 : i32
    return %arg0, %c0_i32 : i32, i32
  }
  func.func @transform_1(%arg0: i32) -> (i32, i32) {
    %c0_i32 = arith.constant 0 : i32
    %c0_i32_0 = arith.constant 0 : i32
    %c0_i32_1 = arith.constant 0 : i32
    return %c0_i32, %c0_i32_0 : i32, i32
  }
  func.func @transform_2(%arg0: i32) -> (i32, i32) {
    %c0_i32 = arith.constant 0 : i32
    %c0_i32_0 = arith.constant 0 : i32
    %c0_i32_1 = arith.constant 0 : i32
    return %c0_i32, %c0_i32_0 : i32, i32
  }
  func.func @transform_3(%arg0: i32) -> (i32, i32) {
    %c0_i32 = arith.constant 0 : i32
    %c0_i32_0 = arith.constant 0 : i32
    %c0_i32_1 = arith.constant 0 : i32
    return %c0_i32, %c0_i32_0 : i32, i32
  }
  func.func @transform_4(%arg0: i32) -> (i32, i32) {
    %c0_i32 = arith.constant 0 : i32
    %c0_i32_0 = arith.constant 0 : i32
    %c0_i32_1 = arith.constant 0 : i32
    return %c0_i32, %c0_i32_0 : i32, i32
  }
  func.func @transform_5(%arg0: i32) -> (i32, i32) {
    %c0_i32 = arith.constant 0 : i32
    %c0_i32_0 = arith.constant 0 : i32
    %c0_i32_1 = arith.constant 0 : i32
    return %c0_i32, %c0_i32_0 : i32, i32
  }
  func.func @transform_6(%arg0: i32) -> (i32, i32) {
    %c0_i32 = arith.constant 0 : i32
    %c0_i32_0 = arith.constant 0 : i32
    %c0_i32_1 = arith.constant 0 : i32
    return %c0_i32, %c0_i32_0 : i32, i32
  }
  func.func @transform_7(%arg0: i32) -> (i32, i32) {
    %c0_i32 = arith.constant 0 : i32
    %c0_i32_0 = arith.constant 0 : i32
    return %arg0, %c0_i32 : i32, i32
  }
}

</mosaic_0001>

<llo_original>
// kernel: tpu_custom_call.1
$region0: #{tpu_custom_call.1}
  #allocation0 [shape = 'u32[]', space=smem, size = 0x4, offset = 0x4, fixed_abs, tag = 'smem constant byte address 0x4 - core index']
  #allocation1 [shape = 'u32[72,128]{1,0:T(1,128)}', space=vmem, size = 0x9000, scoped, tag = 'internal scratch']
  %s0 = inlined_call_operand.vmem [shape: f32[256,3], index: 0, kind: input, shape index: {}]
  %s1 = inlined_call_operand.vmem [shape: f32[3,64], index: 1, kind: input, shape index: {}]
  %s2 = inlined_call_operand.vmem [shape: f32[1,64], index: 2, kind: input, shape index: {}]
  %s3 = inlined_call_operand.vmem [shape: bf16[64,128], index: 3, kind: input, shape index: {}]
  %s4 = inlined_call_operand.vmem [shape: f32[1,128], index: 4, kind: input, shape index: {}]
  %s5 = inlined_call_operand.vmem [shape: bf16[128,128], index: 5, kind: input, shape index: {}]
  %s6 = inlined_call_operand.vmem [shape: f32[1,4], index: 6, kind: input, shape index: {}]
  %s7 = inlined_call_operand.vmem [shape: f32[256,4], index: 7, kind: output, shape index: {}]
  %s8 = sld [smem:[#allocation0]]
  $region38: #{tpu_custom_call.1} parent=0
    _
  %s10 = ssub.s32 1, %s8
  %s11 = scalar_select 0, %s10, %s8
  // Predicated region
  $region2: #{tpu_custom_call.1} parent=0 // pred_check
    _
  $region3: #{tpu_custom_call.1} parent=0 // pred_check_branch
    %13 = sbr.rel (0) target = $region5
  $region4: #{tpu_custom_call.1} parent=0 // pred_region
    _
  $region5: #{tpu_custom_call.1} parent=0 // pred_fallthru
    _
  // Predicated region
  $region6: #{tpu_custom_call.1} parent=0 // pred_check
    _
  $region7: #{tpu_custom_call.1} parent=0 // pred_check_branch
    %15 = sbr.rel (0) target = $region9
  $region8: #{tpu_custom_call.1} parent=0 // pred_region
    _
  $region9: #{tpu_custom_call.1} parent=0 // pred_fallthru
    _
  // Predicated region
  $region10: #{tpu_custom_call.1} parent=0 // pred_check
    _
  $region11: #{tpu_custom_call.1} parent=0 // pred_check_branch
    %17 = sbr.rel (0) target = $region13
  $region12: #{tpu_custom_call.1} parent=0 // pred_region
    _
  $region13: #{tpu_custom_call.1} parent=0 // pred_fallthru
    _
  // Predicated region
  $region14: #{tpu_custom_call.1} parent=0 // pred_check
    _
  $region15: #{tpu_custom_call.1} parent=0 // pred_check_branch
    %19 = sbr.rel (0) target = $region17
  $region16: #{tpu_custom_call.1} parent=0 // pred_region
    _
  $region17: #{tpu_custom_call.1} parent=0 // pred_fallthru
    _
  // Predicated region
  $region18: #{tpu_custom_call.1} parent=0 // pred_check
    _
  $region19: #{tpu_custom_call.1} parent=0 // pred_check_branch
    %21 = sbr.rel (0) target = $region21
  $region20: #{tpu_custom_call.1} parent=0 // pred_region
    _
  $region21: #{tpu_custom_call.1} parent=0 // pred_fallthru
    _
  // Predicated region
  $region22: #{tpu_custom_call.1} parent=0 // pred_check
    _
  $region23: #{tpu_custom_call.1} parent=0 // pred_check_branch
    %23 = sbr.rel (0) target = $region25
  $region24: #{tpu_custom_call.1} parent=0 // pred_region
    _
  $region25: #{tpu_custom_call.1} parent=0 // pred_fallthru
    _
  // Predicated region
  $region26: #{tpu_custom_call.1} parent=0 // pred_check
    _
  $region27: #{tpu_custom_call.1} parent=0 // pred_check_branch
    %25 = sbr.rel (0) target = $region29
  $region28: #{tpu_custom_call.1} parent=0 // pred_region
    _
  $region29: #{tpu_custom_call.1} parent=0 // pred_fallthru
    _
  %v27 = vld [vmem:[%s0] sm:$0xff]
  %v28 = vld [vmem:[%s0 + $0x8] sm:$0xff]
  %v29 = vld [vmem:[%s0 + $0x10] sm:$0xff]
  %v30 = vld [vmem:[%s0 + $0x18] sm:$0xff]
  %v31 = vld [vmem:[%s0 + $0x20] sm:$0xff]
  %v32 = vld [vmem:[%s0 + $0x28] sm:$0xff]
  %v33 = vld [vmem:[%s0 + $0x30] sm:$0xff]
  %v34 = vld [vmem:[%s0 + $0x38] sm:$0xff]
  %v35 = vld [vmem:[%s0 + $0x40] sm:$0xff]
  %v36 = vld [vmem:[%s0 + $0x48] sm:$0xff]
  %v37 = vld [vmem:[%s0 + $0x50] sm:$0xff]
  %v38 = vld [vmem:[%s0 + $0x58] sm:$0xff]
  %v39 = vld [vmem:[%s0 + $0x60] sm:$0xff]
  %v40 = vld [vmem:[%s0 + $0x68] sm:$0xff]
  %v41 = vld [vmem:[%s0 + $0x70] sm:$0xff]
  %v42 = vld [vmem:[%s0 + $0x78] sm:$0xff]
  %v43 = vld [vmem:[%s0 + $0x80] sm:$0xff]
  %v44 = vld [vmem:[%s0 + $0x88] sm:$0xff]
  %v45 = vld [vmem:[%s0 + $0x90] sm:$0xff]
  %v46 = vld [vmem:[%s0 + $0x98] sm:$0xff]
  %v47 = vld [vmem:[%s0 + $0xa0] sm:$0xff]
  %v48 = vld [vmem:[%s0 + $0xa8] sm:$0xff]
  %v49 = vld [vmem:[%s0 + $0xb0] sm:$0xff]
  %v50 = vld [vmem:[%s0 + $0xb8] sm:$0xff]
  %v51 = vld [vmem:[%s0 + $0xc0] sm:$0xff]
  %v52 = vld [vmem:[%s0 + $0xc8] sm:$0xff]
  %v53 = vld [vmem:[%s0 + $0xd0] sm:$0xff]
  %v54 = vld [vmem:[%s0 + $0xd8] sm:$0xff]
  %v55 = vld [vmem:[%s0 + $0xe0] sm:$0xff]
  %v56 = vld [vmem:[%s0 + $0xe8] sm:$0xff]
  %v57 = vld [vmem:[%s0 + $0xf0] sm:$0xff]
  %v58 = vld [vmem:[%s0 + $0xf8] sm:$0xff]
  %v59 = vld [vmem:[%s1] sm:$0x7]
  %61 = vset.pattern.permute.xlu0 0
  %62 = vperm.xlu0 %61, %v27
  %v63 = vpop.permute.xlu0 %62
  %66 = vset.pattern.permute.xlu0 0
  %67 = vperm.xlu0 %66, %v28
  %v68 = vpop.permute.xlu0 %67
  %71 = vset.pattern.permute.xlu0 0
  %72 = vperm.xlu0 %71, %v29
  %v73 = vpop.permute.xlu0 %72
  %76 = vset.pattern.permute.xlu0 0
  %77 = vperm.xlu0 %76, %v30
  %v78 = vpop.permute.xlu0 %77
  %81 = vset.pattern.permute.xlu0 0
  %82 = vperm.xlu0 %81, %v31
  %v83 = vpop.permute.xlu0 %82
  %86 = vset.pattern.permute.xlu0 0
  %87 = vperm.xlu0 %86, %v32
  %v88 = vpop.permute.xlu0 %87
  %91 = vset.pattern.permute.xlu0 0
  %92 = vperm.xlu0 %91, %v33
  %v93 = vpop.permute.xlu0 %92
  %96 = vset.pattern.permute.xlu0 0
  %97 = vperm.xlu0 %96, %v34
  %v98 = vpop.permute.xlu0 %97
  %101 = vset.pattern.permute.xlu0 0
  %102 = vperm.xlu0 %101, %v35
  %v103 = vpop.permute.xlu0 %102
  %106 = vset.pattern.permute.xlu0 0
  %107 = vperm.xlu0 %106, %v36
  %v108 = vpop.permute.xlu0 %107
  %111 = vset.pattern.permute.xlu0 0
  %112 = vperm.xlu0 %111, %v37
  %v113 = vpop.permute.xlu0 %112
  %116 = vset.pattern.permute.xlu0 0
  %117 = vperm.xlu0 %116, %v38
  %v118 = vpop.permute.xlu0 %117
  %121 = vset.pattern.permute.xlu0 0
  %122 = vperm.xlu0 %121, %v39
  %v123 = vpop.permute.xlu0 %122
  %126 = vset.pattern.permute.xlu0 0
  %127 = vperm.xlu0 %126, %v40
  %v128 = vpop.permute.xlu0 %127
  %131 = vset.pattern.permute.xlu0 0
  %132 = vperm.xlu0 %131, %v41
  %v133 = vpop.permute.xlu0 %132
  %136 = vset.pattern.permute.xlu0 0
  %137 = vperm.xlu0 %136, %v42
  %v138 = vpop.permute.xlu0 %137
  %141 = vset.pattern.permute.xlu0 0
  %142 = vperm.xlu0 %141, %v43
  %v143 = vpop.permute.xlu0 %142
  %146 = vset.pattern.permute.xlu0 0
  %147 = vperm.xlu0 %146, %v44
  %v148 = vpop.permute.xlu0 %147
  %151 = vset.pattern.permute.xlu0 0
  %152 = vperm.xlu0 %151, %v45
  %v153 = vpop.permute.xlu0 %152
  %156 = vset.pattern.permute.xlu0 0
  %157 = vperm.xlu0 %156, %v46
  %v158 = vpop.permute.xlu0 %157
  %161 = vset.pattern.permute.xlu0 0
  %162 = vperm.xlu0 %161, %v47
  %v163 = vpop.permute.xlu0 %162
  %166 = vset.pattern.permute.xlu0 0
  %167 = vperm.xlu0 %166, %v48
  %v168 = vpop.permute.xlu0 %167
  %171 = vset.pattern.permute.xlu0 0
  %172 = vperm.xlu0 %171, %v49
  %v173 = vpop.permute.xlu0 %172
  %176 = vset.pattern.permute.xlu0 0
  %177 = vperm.xlu0 %176, %v50
  %v178 = vpop.permute.xlu0 %177
  %181 = vset.pattern.permute.xlu0 0
  %182 = vperm.xlu0 %181, %v51
  %v183 = vpop.permute.xlu0 %182
  %186 = vset.pattern.permute.xlu0 0
  %187 = vperm.xlu0 %186, %v52
  %v188 = vpop.permute.xlu0 %187
  %191 = vset.pattern.permute.xlu0 0
  %192 = vperm.xlu0 %191, %v53
  %v193 = vpop.permute.xlu0 %192
  %196 = vset.pattern.permute.xlu0 0
  %197 = vperm.xlu0 %196, %v54
  %v198 = vpop.permute.xlu0 %197
  %201 = vset.pattern.permute.xlu0 0
  %202 = vperm.xlu0 %201, %v55
  %v203 = vpop.permute.xlu0 %202
  %206 = vset.pattern.permute.xlu0 0
  %207 = vperm.xlu0 %206, %v56
  %v208 = vpop.permute.xlu0 %207
  %211 = vset.pattern.permute.xlu0 0
  %212 = vperm.xlu0 %211, %v57
  %v213 = vpop.permute.xlu0 %212
  %216 = vset.pattern.permute.xlu0 0
  %217 = vperm.xlu0 %216, %v58
  %v218 = vpop.permute.xlu0 %217
  %v220 = vperm.slane %v59, 0
  %v221 = vmul.f32 %v63, %v220
  %v222 = vmul.f32 %v68, %v220
  %v223 = vmul.f32 %v73, %v220
  %v224 = vmul.f32 %v78, %v220
  %v225 = vmul.f32 %v83, %v220
  %v226 = vmul.f32 %v88, %v220
  %v227 = vmul.f32 %v93, %v220
  %v228 = vmul.f32 %v98, %v220
  %v229 = vmul.f32 %v103, %v220
  %v230 = vmul.f32 %v108, %v220
  %v231 = vmul.f32 %v113, %v220
  %v232 = vmul.f32 %v118, %v220
  %v233 = vmul.f32 %v123, %v220
  %v234 = vmul.f32 %v128, %v220
  %v235 = vmul.f32 %v133, %v220
  %v236 = vmul.f32 %v138, %v220
  %v237 = vmul.f32 %v143, %v220
  %v238 = vmul.f32 %v148, %v220
  %v239 = vmul.f32 %v153, %v220
  %v240 = vmul.f32 %v158, %v220
  %v241 = vmul.f32 %v163, %v220
  %v242 = vmul.f32 %v168, %v220
  %v243 = vmul.f32 %v173, %v220
  %v244 = vmul.f32 %v178, %v220
  %v245 = vmul.f32 %v183, %v220
  %v246 = vmul.f32 %v188, %v220
  %v247 = vmul.f32 %v193, %v220
  %v248 = vmul.f32 %v198, %v220
  %v249 = vmul.f32 %v203, %v220
  %v250 = vmul.f32 %v208, %v220
  %v251 = vmul.f32 %v213, %v220
  %v252 = vmul.f32 %v218, %v220
  %253 = vset.pattern.permute.xlu0 1
  %254 = vperm.xlu0 %253, %v27
  %v255 = vpop.permute.xlu0 %254
  %257 = vset.pattern.permute.xlu0 1
  %258 = vperm.xlu0 %257, %v28
  %v259 = vpop.permute.xlu0 %258
  %261 = vset.pattern.permute.xlu0 1
  %262 = vperm.xlu0 %261, %v29
  %v263 = vpop.permute.xlu0 %262
  %265 = vset.pattern.permute.xlu0 1
  %266 = vperm.xlu0 %265, %v30
  %v267 = vpop.permute.xlu0 %266
  %269 = vset.pattern.permute.xlu0 1
  %270 = vperm.xlu0 %269, %v31
  %v271 = vpop.permute.xlu0 %270
  %273 = vset.pattern.permute.xlu0 1
  %274 = vperm.xlu0 %273, %v32
  %v275 = vpop.permute.xlu0 %274
  %277 = vset.pattern.permute.xlu0 1
  %278 = vperm.xlu0 %277, %v33
  %v279 = vpop.permute.xlu0 %278
  %281 = vset.pattern.permute.xlu0 1
  %282 = vperm.xlu0 %281, %v34
  %v283 = vpop.permute.xlu0 %282
  %285 = vset.pattern.permute.xlu0 1
  %286 = vperm.xlu0 %285, %v35
  %v287 = vpop.permute.xlu0 %286
  %289 = vset.pattern.permute.xlu0 1
  %290 = vperm.xlu0 %289, %v36
  %v291 = vpop.permute.xlu0 %290
  %293 = vset.pattern.permute.xlu0 1
  %294 = vperm.xlu0 %293, %v37
  %v295 = vpop.permute.xlu0 %294
  %297 = vset.pattern.permute.xlu0 1
  %298 = vperm.xlu0 %297, %v38
  %v299 = vpop.permute.xlu0 %298
  %301 = vset.pattern.permute.xlu0 1
  %302 = vperm.xlu0 %301, %v39
  %v303 = vpop.permute.xlu0 %302
  %305 = vset.pattern.permute.xlu0 1
  %306 = vperm.xlu0 %305, %v40
  %v307 = vpop.permute.xlu0 %306
  %309 = vset.pattern.permute.xlu0 1
  %310 = vperm.xlu0 %309, %v41
  %v311 = vpop.permute.xlu0 %310
  %313 = vset.pattern.permute.xlu0 1
  %314 = vperm.xlu0 %313, %v42
  %v315 = vpop.permute.xlu0 %314
  %317 = vset.pattern.permute.xlu0 1
  %318 = vperm.xlu0 %317, %v43
  %v319 = vpop.permute.xlu0 %318
  %321 = vset.pattern.permute.xlu0 1
  %322 = vperm.xlu0 %321, %v44
  %v323 = vpop.permute.xlu0 %322
  %325 = vset.pattern.permute.xlu0 1
  %326 = vperm.xlu0 %325, %v45
  %v327 = vpop.permute.xlu0 %326
  %329 = vset.pattern.permute.xlu0 1
  %330 = vperm.xlu0 %329, %v46
  %v331 = vpop.permute.xlu0 %330
  %333 = vset.pattern.permute.xlu0 1
  %334 = vperm.xlu0 %333, %v47
  %v335 = vpop.permute.xlu0 %334
  %337 = vset.pattern.permute.xlu0 1
  %338 = vperm.xlu0 %337, %v48
  %v339 = vpop.permute.xlu0 %338
  %341 = vset.pattern.permute.xlu0 1
  %342 = vperm.xlu0 %341, %v49
  %v343 = vpop.permute.xlu0 %342
  %345 = vset.pattern.permute.xlu0 1
  %346 = vperm.xlu0 %345, %v50
  %v347 = vpop.permute.xlu0 %346
  %349 = vset.pattern.permute.xlu0 1
  %350 = vperm.xlu0 %349, %v51
  %v351 = vpop.permute.xlu0 %350
  %353 = vset.pattern.permute.xlu0 1
  %354 = vperm.xlu0 %353, %v52
  %v355 = vpop.permute.xlu0 %354
  %357 = vset.pattern.permute.xlu0 1
  %358 = vperm.xlu0 %357, %v53
  %v359 = vpop.permute.xlu0 %358
  %361 = vset.pattern.permute.xlu0 1
  %362 = vperm.xlu0 %361, %v54
  %v363 = vpop.permute.xlu0 %362
  %365 = vset.pattern.permute.xlu0 1
  %366 = vperm.xlu0 %365, %v55
  %v367 = vpop.permute.xlu0 %366
  %369 = vset.pattern.permute.xlu0 1
  %370 = vperm.xlu0 %369, %v56
  %v371 = vpop.permute.xlu0 %370
  %373 = vset.pattern.permute.xlu0 1
  %374 = vperm.xlu0 %373, %v57
  %v375 = vpop.permute.xlu0 %374
  %377 = vset.pattern.permute.xlu0 1
  %378 = vperm.xlu0 %377, %v58
  %v379 = vpop.permute.xlu0 %378
  %v381 = vperm.slane %v59, 1
  %v382 = vmul.f32 %v255, %v381
  %v383 = vmul.f32 %v259, %v381
  %v384 = vmul.f32 %v263, %v381
  %v385 = vmul.f32 %v267, %v381
  %v386 = vmul.f32 %v271, %v381
  %v387 = vmul.f32 %v275, %v381
  %v388 = vmul.f32 %v279, %v381
  %v389 = vmul.f32 %v283, %v381
  %v390 = vmul.f32 %v287, %v381
  %v391 = vmul.f32 %v291, %v381
  %v392 = vmul.f32 %v295, %v381
  %v393 = vmul.f32 %v299, %v381
  %v394 = vmul.f32 %v303, %v381
  %v395 = vmul.f32 %v307, %v381
  %v396 = vmul.f32 %v311, %v381
  %v397 = vmul.f32 %v315, %v381
  %v398 = vmul.f32 %v319, %v381
  %v399 = vmul.f32 %v323, %v381
  %v400 = vmul.f32 %v327, %v381
  %v401 = vmul.f32 %v331, %v381
  %v402 = vmul.f32 %v335, %v381
  %v403 = vmul.f32 %v339, %v381
  %v404 = vmul.f32 %v343, %v381
  %v405 = vmul.f32 %v347, %v381
  %v406 = vmul.f32 %v351, %v381
  %v407 = vmul.f32 %v355, %v381
  %v408 = vmul.f32 %v359, %v381
  %v409 = vmul.f32 %v363, %v381
  %v410 = vmul.f32 %v367, %v381
  %v411 = vmul.f32 %v371, %v381
  %v412 = vmul.f32 %v375, %v381
  %v413 = vmul.f32 %v379, %v381
  %v414 = vadd.f32 %v221, %v382
  %v415 = vadd.f32 %v222, %v383
  %v416 = vadd.f32 %v223, %v384
  %v417 = vadd.f32 %v224, %v385
  %v418 = vadd.f32 %v225, %v386
  %v419 = vadd.f32 %v226, %v387
  %v420 = vadd.f32 %v227, %v388
  %v421 = vadd.f32 %v228, %v389
  %v422 = vadd.f32 %v229, %v390
  %v423 = vadd.f32 %v230, %v391
  %v424 = vadd.f32 %v231, %v392
  %v425 = vadd.f32 %v232, %v393
  %v426 = vadd.f32 %v233, %v394
  %v427 = vadd.f32 %v234, %v395
  %v428 = vadd.f32 %v235, %v396
  %v429 = vadd.f32 %v236, %v397
  %v430 = vadd.f32 %v237, %v398
  %v431 = vadd.f32 %v238, %v399
  %v432 = vadd.f32 %v239, %v400
  %v433 = vadd.f32 %v240, %v401
  %v434 = vadd.f32 %v241, %v402
  %v435 = vadd.f32 %v242, %v403
  %v436 = vadd.f32 %v243, %v404
  %v437 = vadd.f32 %v244, %v405
  %v438 = vadd.f32 %v245, %v406
  %v439 = vadd.f32 %v246, %v407
  %v440 = vadd.f32 %v247, %v408
  %v441 = vadd.f32 %v248, %v409
  %v442 = vadd.f32 %v249, %v410
  %v443 = vadd.f32 %v250, %v411
  %v444 = vadd.f32 %v251, %v412
  %v445 = vadd.f32 %v252, %v413
  %446 = vset.pattern.permute.xlu0 2
  %447 = vperm.xlu0 %446, %v27
  %v448 = vpop.permute.xlu0 %447
  %450 = vset.pattern.permute.xlu0 2
  %451 = vperm.xlu0 %450, %v28
  %v452 = vpop.permute.xlu0 %451
  %454 = vset.pattern.permute.xlu0 2
  %455 = vperm.xlu0 %454, %v29
  %v456 = vpop.permute.xlu0 %455
  %458 = vset.pattern.permute.xlu0 2
  %459 = vperm.xlu0 %458, %v30
  %v460 = vpop.permute.xlu0 %459
  %462 = vset.pattern.permute.xlu0 2
  %463 = vperm.xlu0 %462, %v31
  %v464 = vpop.permute.xlu0 %463
  %466 = vset.pattern.permute.xlu0 2
  %467 = vperm.xlu0 %466, %v32
  %v468 = vpop.permute.xlu0 %467
  %470 = vset.pattern.permute.xlu0 2
  %471 = vperm.xlu0 %470, %v33
  %v472 = vpop.permute.xlu0 %471
  %474 = vset.pattern.permute.xlu0 2
  %475 = vperm.xlu0 %474, %v34
  %v476 = vpop.permute.xlu0 %475
  %478 = vset.pattern.permute.xlu0 2
  %479 = vperm.xlu0 %478, %v35
  %v480 = vpop.permute.xlu0 %479
  %482 = vset.pattern.permute.xlu0 2
  %483 = vperm.xlu0 %482, %v36
  %v484 = vpop.permute.xlu0 %483
  %486 = vset.pattern.permute.xlu0 2
  %487 = vperm.xlu0 %486, %v37
  %v488 = vpop.permute.xlu0 %487
  %490 = vset.pattern.permute.xlu0 2
  %491 = vperm.xlu0 %490, %v38
  %v492 = vpop.permute.xlu0 %491
  %494 = vset.pattern.permute.xlu0 2
  %495 = vperm.xlu0 %494, %v39
  %v496 = vpop.permute.xlu0 %495
  %498 = vset.pattern.permute.xlu0 2
  %499 = vperm.xlu0 %498, %v40
  %v500 = vpop.permute.xlu0 %499
  %502 = vset.pattern.permute.xlu0 2
  %503 = vperm.xlu0 %502, %v41
  %v504 = vpop.permute.xlu0 %503
  %506 = vset.pattern.permute.xlu0 2
  %507 = vperm.xlu0 %506, %v42
  %v508 = vpop.permute.xlu0 %507
  %510 = vset.pattern.permute.xlu0 2
  %511 = vperm.xlu0 %510, %v43
  %v512 = vpop.permute.xlu0 %511
  %514 = vset.pattern.permute.xlu0 2
  %515 = vperm.xlu0 %514, %v44
  %v516 = vpop.permute.xlu0 %515
  %518 = vset.pattern.permute.xlu0 2
  %519 = vperm.xlu0 %518, %v45
  %v520 = vpop.permute.xlu0 %519
  %522 = vset.pattern.permute.xlu0 2
  %523 = vperm.xlu0 %522, %v46
  %v524 = vpop.permute.xlu0 %523
  %526 = vset.pattern.permute.xlu0 2
  %527 = vperm.xlu0 %526, %v47
  %v528 = vpop.permute.xlu0 %527
  %530 = vset.pattern.permute.xlu0 2
  %531 = vperm.xlu0 %530, %v48
  %v532 = vpop.permute.xlu0 %531
  %534 = vset.pattern.permute.xlu0 2
  %535 = vperm.xlu0 %534, %v49
  %v536 = vpop.permute.xlu0 %535
  %538 = vset.pattern.permute.xlu0 2
  %539 = vperm.xlu0 %538, %v50
  %v540 = vpop.permute.xlu0 %539
  %542 = vset.pattern.permute.xlu0 2
  %543 = vperm.xlu0 %542, %v51
  %v544 = vpop.permute.xlu0 %543
  %546 = vset.pattern.permute.xlu0 2
  %547 = vperm.xlu0 %546, %v52
  %v548 = vpop.permute.xlu0 %547
  %550 = vset.pattern.permute.xlu0 2
  %551 = vperm.xlu0 %550, %v53
  %v552 = vpop.permute.xlu0 %551
  %554 = vset.pattern.permute.xlu0 2
  %555 = vperm.xlu0 %554, %v54
  %v556 = vpop.permute.xlu0 %555
  %558 = vset.pattern.permute.xlu0 2
  %559 = vperm.xlu0 %558, %v55
  %v560 = vpop.permute.xlu0 %559
  %562 = vset.pattern.permute.xlu0 2
  %563 = vperm.xlu0 %562, %v56
  %v564 = vpop.permute.xlu0 %563
  %566 = vset.pattern.permute.xlu0 2
  %567 = vperm.xlu0 %566, %v57
  %v568 = vpop.permute.xlu0 %567
  %570 = vset.pattern.permute.xlu0 2
  %571 = vperm.xlu0 %570, %v58
  %v572 = vpop.permute.xlu0 %571
  %v574 = vperm.slane %v59, 2
  %v575 = vmul.f32 %v448, %v574
  %v576 = vmul.f32 %v452, %v574
  %v577 = vmul.f32 %v456, %v574
  %v578 = vmul.f32 %v460, %v574
  %v579 = vmul.f32 %v464, %v574
  %v580 = vmul.f32 %v468, %v574
  %v581 = vmul.f32 %v472, %v574
  %v582 = vmul.f32 %v476, %v574
  %v583 = vmul.f32 %v480, %v574
  %v584 = vmul.f32 %v484, %v574
  %v585 = vmul.f32 %v488, %v574
  %v586 = vmul.f32 %v492, %v574
  %v587 = vmul.f32 %v496, %v574
  %v588 = vmul.f32 %v500, %v574
  %v589 = vmul.f32 %v504, %v574
  %v590 = vmul.f32 %v508, %v574
  %v591 = vmul.f32 %v512, %v574
  %v592 = vmul.f32 %v516, %v574
  %v593 = vmul.f32 %v520, %v574
  %v594 = vmul.f32 %v524, %v574
  %v595 = vmul.f32 %v528, %v574
  %v596 = vmul.f32 %v532, %v574
  %v597 = vmul.f32 %v536, %v574
  %v598 = vmul.f32 %v540, %v574
  %v599 = vmul.f32 %v544, %v574
  %v600 = vmul.f32 %v548, %v574
  %v601 = vmul.f32 %v552, %v574
  %v602 = vmul.f32 %v556, %v574
  %v603 = vmul.f32 %v560, %v574
  %v604 = vmul.f32 %v564, %v574
  %v605 = vmul.f32 %v568, %v574
  %v606 = vmul.f32 %v572, %v574
  %v607 = vadd.f32 %v414, %v575
  %v608 = vadd.f32 %v415, %v576
  %v609 = vadd.f32 %v416, %v577
  %v610 = vadd.f32 %v417, %v578
  %v611 = vadd.f32 %v418, %v579
  %v612 = vadd.f32 %v419, %v580
  %v613 = vadd.f32 %v420, %v581
  %v614 = vadd.f32 %v421, %v582
  %v615 = vadd.f32 %v422, %v583
  %v616 = vadd.f32 %v423, %v584
  %v617 = vadd.f32 %v424, %v585
  %v618 = vadd.f32 %v425, %v586
  %v619 = vadd.f32 %v426, %v587
  %v620 = vadd.f32 %v427, %v588
  %v621 = vadd.f32 %v428, %v589
  %v622 = vadd.f32 %v429, %v590
  %v623 = vadd.f32 %v430, %v591
  %v624 = vadd.f32 %v431, %v592
  %v625 = vadd.f32 %v432, %v593
  %v626 = vadd.f32 %v433, %v594
  %v627 = vadd.f32 %v434, %v595
  %v628 = vadd.f32 %v435, %v596
  %v629 = vadd.f32 %v436, %v597
  %v630 = vadd.f32 %v437, %v598
  %v631 = vadd.f32 %v438, %v599
  %v632 = vadd.f32 %v439, %v600
  %v633 = vadd.f32 %v440, %v601
  %v634 = vadd.f32 %v441, %v602
  %v635 = vadd.f32 %v442, %v603
  %v636 = vadd.f32 %v443, %v604
  %v637 = vadd.f32 %v444, %v605
  %v638 = vadd.f32 %v445, %v606
  %v639 = vld [vmem:[%s2] sm:$0x1]
  %v641 = vperm.slane %v639, 0
  %v643 = vadd.f32 %v607, %v641
  %v644 = vadd.f32 %v608, %v641
  %v645 = vadd.f32 %v609, %v641
  %v646 = vadd.f32 %v610, %v641
  %v647 = vadd.f32 %v611, %v641
  %v648 = vadd.f32 %v612, %v641
  %v649 = vadd.f32 %v613, %v641
  %v650 = vadd.f32 %v614, %v641
  %v651 = vadd.f32 %v615, %v641
  %v652 = vadd.f32 %v616, %v641
  %v653 = vadd.f32 %v617, %v641
  %v654 = vadd.f32 %v618, %v641
  %v655 = vadd.f32 %v619, %v641
  %v656 = vadd.f32 %v620, %v641
  %v657 = vadd.f32 %v621, %v641
  %v658 = vadd.f32 %v622, %v641
  %v659 = vadd.f32 %v623, %v641
  %v660 = vadd.f32 %v624, %v641
  %v661 = vadd.f32 %v625, %v641
  %v662 = vadd.f32 %v626, %v641
  %v663 = vadd.f32 %v627, %v641
  %v664 = vadd.f32 %v628, %v641
  %v665 = vadd.f32 %v629, %v641
  %v666 = vadd.f32 %v630, %v641
  %v667 = vadd.f32 %v631, %v641
  %v668 = vadd.f32 %v632, %v641
  %v669 = vadd.f32 %v633, %v641
  %v670 = vadd.f32 %v634, %v641
  %v671 = vadd.f32 %v635, %v641
  %v672 = vadd.f32 %v636, %v641
  %v673 = vadd.f32 %v637, %v641
  %v674 = vadd.f32 %v638, %v641
  %v675 = vmax.f32 %v643, 0.0
  %v676 = vmax.f32 %v644, 0.0
  %v677 = vmax.f32 %v645, 0.0
  %v678 = vmax.f32 %v646, 0.0
  %v679 = vmax.f32 %v647, 0.0
  %v680 = vmax.f32 %v648, 0.0
  %v681 = vmax.f32 %v649, 0.0
  %v682 = vmax.f32 %v650, 0.0
  %v683 = vmax.f32 %v651, 0.0
  %v684 = vmax.f32 %v652, 0.0
  %v685 = vmax.f32 %v653, 0.0
  %v686 = vmax.f32 %v654, 0.0
  %v687 = vmax.f32 %v655, 0.0
  %v688 = vmax.f32 %v656, 0.0
  %v689 = vmax.f32 %v657, 0.0
  %v690 = vmax.f32 %v658, 0.0
  %v691 = vmax.f32 %v659, 0.0
  %v692 = vmax.f32 %v660, 0.0
  %v693 = vmax.f32 %v661, 0.0
  %v694 = vmax.f32 %v662, 0.0
  %v695 = vmax.f32 %v663, 0.0
  %v696 = vmax.f32 %v664, 0.0
  %v697 = vmax.f32 %v665, 0.0
  %v698 = vmax.f32 %v666, 0.0
  %v699 = vmax.f32 %v667, 0.0
  %v700 = vmax.f32 %v668, 0.0
  %v701 = vmax.f32 %v669, 0.0
  %v702 = vmax.f32 %v670, 0.0
  %v703 = vmax.f32 %v671, 0.0
  %v704 = vmax.f32 %v672, 0.0
  %v705 = vmax.f32 %v673, 0.0
  %v706 = vmax.f32 %v674, 0.0
  %v707 = vpack.c.bf16 %v676, %v675
  %v708 = vpack.c.bf16 %v678, %v677
  %v709 = vpack.c.bf16 %v680, %v679
  %v710 = vpack.c.bf16 %v682, %v681
  %v711 = vpack.c.bf16 %v684, %v683
  %v712 = vpack.c.bf16 %v686, %v685
  %v713 = vpack.c.bf16 %v688, %v687
  %v714 = vpack.c.bf16 %v690, %v689
  %v715 = vpack.c.bf16 %v692, %v691
  %v716 = vpack.c.bf16 %v694, %v693
  %v717 = vpack.c.bf16 %v696, %v695
  %v718 = vpack.c.bf16 %v698, %v697
  %v719 = vpack.c.bf16 %v700, %v699
  %v720 = vpack.c.bf16 %v702, %v701
  %v721 = vpack.c.bf16 %v704, %v703
  %v722 = vpack.c.bf16 %v706, %v705
  %v723 = vld [vmem:[%s3] sm:$0xf]
  %v724 = vld [vmem:[%s3 + $0x4] sm:$0xf]
  %v725 = vld [vmem:[%s3 + $0x8] sm:$0xf]
  %v726 = vld [vmem:[%s3 + $0xc] sm:$0xf]
  %v727 = vld [vmem:[%s3 + $0x10] sm:$0xf]
  %v728 = vld [vmem:[%s3 + $0x14] sm:$0xf]
  %v729 = vld [vmem:[%s3 + $0x18] sm:$0xf]
  %v730 = vld [vmem:[%s3 + $0x1c] sm:$0xf]
  %v739 = vunpack.c.l.b16 %v723
  %v740 = vunpack.c.l.b16 %v724
  %v741 = vunpack.c.l.b16 %v725
  %v742 = vunpack.c.l.b16 %v726
  %v743 = vunpack.c.l.b16 %v727
  %v744 = vunpack.c.l.b16 %v728
  %v745 = vunpack.c.l.b16 %v729
  %v746 = vunpack.c.l.b16 %v730
  %v747 = vpack.c.b16 %v740, %v739
  %v748 = vpack.c.b16 %v742, %v741
  %v749 = vpack.c.b16 %v744, %v743
  %v750 = vpack.c.b16 %v746, %v745
  %vm755 = vcmask 523264
  %v757 = vsel %vm755, %v707, 0
  %v760 = vsel %vm755, %v708, 0
  %v763 = vsel %vm755, %v709, 0
  %v766 = vsel %vm755, %v710, 0
  %v769 = vsel %vm755, %v711, 0
  %v772 = vsel %vm755, %v712, 0
  %v775 = vsel %vm755, %v713, 0
  %v778 = vsel %vm755, %v714, 0
  %v781 = vsel %vm755, %v715, 0
  %v784 = vsel %vm755, %v716, 0
  %v787 = vsel %vm755, %v717, 0
  %v790 = vsel %vm755, %v718, 0
  %v793 = vsel %vm755, %v719, 0
  %v796 = vsel %vm755, %v720, 0
  %v799 = vsel %vm755, %v721, 0
  %v802 = vsel %vm755, %v722, 0
  %804 = vmatpush.bf16.msra.mxu0 0
  %805 = vmatpush.bf16.msra.mxu0 0
  %806 = vmatpush.bf16.msra.mxu0 0
  %807 = vmatpush.bf16.msra.mxu0 0
  %808 = vmatpush.bf16.msra.mxu0 %v750
  %809 = vmatpush.bf16.msra.mxu0 %v749
  %810 = vmatpush.bf16.msra.mxu0 %v748
  %811 = vmatpush.bf16.msra.mxu0 %v747
  %812 = vmatmul.bf16.gmra.mxu0 %v757
  %v813 = vpop.f32.mrf.mxu0
  %v814 = vadd.f32 0.0, %v813
  %v815 = vpop.f32.mrf.mxu0
  %v816 = vadd.f32 0.0, %v815
  %817 = vmatmul.bf16.gmra.mxu0 %v760
  %v818 = vpop.f32.mrf.mxu0
  %v819 = vadd.f32 0.0, %v818
  %v820 = vpop.f32.mrf.mxu0
  %v821 = vadd.f32 0.0, %v820
  %822 = vmatmul.bf16.gmra.mxu0 %v763
  %v823 = vpop.f32.mrf.mxu0
  %v824 = vadd.f32 0.0, %v823
  %v825 = vpop.f32.mrf.mxu0
  %v826 = vadd.f32 0.0, %v825
  %827 = vmatmul.bf16.gmra.mxu0 %v766
  %v828 = vpop.f32.mrf.mxu0
  %v829 = vadd.f32 0.0, %v828
  %v830 = vpop.f32.mrf.mxu0
  %v831 = vadd.f32 0.0, %v830
  %832 = vmatmul.bf16.gmra.mxu0 %v769
  %v833 = vpop.f32.mrf.mxu0
  %v834 = vadd.f32 0.0, %v833
  %v835 = vpop.f32.mrf.mxu0
  %v836 = vadd.f32 0.0, %v835
  %837 = vmatmul.bf16.gmra.mxu0 %v772
  %v838 = vpop.f32.mrf.mxu0
  %v839 = vadd.f32 0.0, %v838
  %v840 = vpop.f32.mrf.mxu0
  %v841 = vadd.f32 0.0, %v840
  %842 = vmatmul.bf16.gmra.mxu0 %v775
  %v843 = vpop.f32.mrf.mxu0
  %v844 = vadd.f32 0.0, %v843
  %v845 = vpop.f32.mrf.mxu0
  %v846 = vadd.f32 0.0, %v845
  %847 = vmatmul.bf16.gmra.mxu0 %v778
  %v848 = vpop.f32.mrf.mxu0
  %v849 = vadd.f32 0.0, %v848
  %v850 = vpop.f32.mrf.mxu0
  %v851 = vadd.f32 0.0, %v850
  %852 = vmatmul.bf16.gmra.mxu0 %v781
  %v853 = vpop.f32.mrf.mxu0
  %v854 = vadd.f32 0.0, %v853
  %v855 = vpop.f32.mrf.mxu0
  %v856 = vadd.f32 0.0, %v855
  %857 = vmatmul.bf16.gmra.mxu0 %v784
  %v858 = vpop.f32.mrf.mxu0
  %v859 = vadd.f32 0.0, %v858
  %v860 = vpop.f32.mrf.mxu0
  %v861 = vadd.f32 0.0, %v860
  %862 = vmatmul.bf16.gmra.mxu0 %v787
  %v863 = vpop.f32.mrf.mxu0
  %v864 = vadd.f32 0.0, %v863
  %v865 = vpop.f32.mrf.mxu0
  %v866 = vadd.f32 0.0, %v865
  %867 = vmatmul.bf16.gmra.mxu0 %v790
  %v868 = vpop.f32.mrf.mxu0
  %v869 = vadd.f32 0.0, %v868
  %v870 = vpop.f32.mrf.mxu0
  %v871 = vadd.f32 0.0, %v870
  %872 = vmatmul.bf16.gmra.mxu0 %v793
  %v873 = vpop.f32.mrf.mxu0
  %v874 = vadd.f32 0.0, %v873
  %v875 = vpop.f32.mrf.mxu0
  %v876 = vadd.f32 0.0, %v875
  %877 = vmatmul.bf16.gmra.mxu0 %v796
  %v878 = vpop.f32.mrf.mxu0
  %v879 = vadd.f32 0.0, %v878
  %v880 = vpop.f32.mrf.mxu0
  %v881 = vadd.f32 0.0, %v880
  %882 = vmatmul.bf16.gmra.mxu0 %v799
  %v883 = vpop.f32.mrf.mxu0
  %v884 = vadd.f32 0.0, %v883
  %v885 = vpop.f32.mrf.mxu0
  %v886 = vadd.f32 0.0, %v885
  %887 = vmatmul.bf16.gmra.mxu0 %v802
  %v888 = vpop.f32.mrf.mxu0
  %v889 = vadd.f32 0.0, %v888
  %v890 = vpop.f32.mrf.mxu0
  %v891 = vadd.f32 0.0, %v890
  %892 = vdwg.mxu0
  %v893 = vpack.c.bf16 %v814, %v814
  %v894 = vpack.c.bf16 %v816, %v816
  %v895 = vpack.c.bf16 %v819, %v819
  %v896 = vpack.c.bf16 %v821, %v821
  %v897 = vpack.c.bf16 %v824, %v824
  %v898 = vpack.c.bf16 %v826, %v826
  %v899 = vpack.c.bf16 %v829, %v829
  %v900 = vpack.c.bf16 %v831, %v831
  %v901 = vpack.c.bf16 %v834, %v834
  %v902 = vpack.c.bf16 %v836, %v836
  %v903 = vpack.c.bf16 %v839, %v839
  %v904 = vpack.c.bf16 %v841, %v841
  %v905 = vpack.c.bf16 %v844, %v844
  %v906 = vpack.c.bf16 %v846, %v846
  %v907 = vpack.c.bf16 %v849, %v849
  %v908 = vpack.c.bf16 %v851, %v851
  %v909 = vpack.c.bf16 %v854, %v854
  %v910 = vpack.c.bf16 %v856, %v856
  %v911 = vpack.c.bf16 %v859, %v859
  %v912 = vpack.c.bf16 %v861, %v861
  %v913 = vpack.c.bf16 %v864, %v864
  %v914 = vpack.c.bf16 %v866, %v866
  %v915 = vpack.c.bf16 %v869, %v869
  %v916 = vpack.c.bf16 %v871, %v871
  %v917 = vpack.c.bf16 %v874, %v874
  %v918 = vpack.c.bf16 %v876, %v876
  %v919 = vpack.c.bf16 %v879, %v879
  %v920 = vpack.c.bf16 %v881, %v881
  %v921 = vpack.c.bf16 %v884, %v884
  %v922 = vpack.c.bf16 %v886, %v886
  %v923 = vpack.c.bf16 %v889, %v889
  %v924 = vpack.c.bf16 %v891, %v891
  %v925 = vld [vmem:[%s4] sm:$0x1]
  %v926 = vpack.c.bf16 %v925, %v925
  %v928 = vpack.i.b16 %v926, %v926
  %v930 = vperm.slane %v928, 0
  %v931 = vunpack.c.l.bf16 %v893
  %v932 = vunpack.c.l.bf16 %v894
  %v933 = vunpack.c.l.bf16 %v895
  %v934 = vunpack.c.l.bf16 %v896
  %v935 = vunpack.c.l.bf16 %v897
  %v936 = vunpack.c.l.bf16 %v898
  %v937 = vunpack.c.l.bf16 %v899
  %v938 = vunpack.c.l.bf16 %v900
  %v939 = vunpack.c.l.bf16 %v901
  %v940 = vunpack.c.l.bf16 %v902
  %v941 = vunpack.c.l.bf16 %v903
  %v942 = vunpack.c.l.bf16 %v904
  %v943 = vunpack.c.l.bf16 %v905
  %v944 = vunpack.c.l.bf16 %v906
  %v945 = vunpack.c.l.bf16 %v907
  %v946 = vunpack.c.l.bf16 %v908
  %v947 = vunpack.c.l.bf16 %v909
  %v948 = vunpack.c.l.bf16 %v910
  %v949 = vunpack.c.l.bf16 %v911
  %v950 = vunpack.c.l.bf16 %v912
  %v951 = vunpack.c.l.bf16 %v913
  %v952 = vunpack.c.l.bf16 %v914
  %v953 = vunpack.c.l.bf16 %v915
  %v954 = vunpack.c.l.bf16 %v916
  %v955 = vunpack.c.l.bf16 %v917
  %v956 = vunpack.c.l.bf16 %v918
  %v957 = vunpack.c.l.bf16 %v919
  %v958 = vunpack.c.l.bf16 %v920
  %v959 = vunpack.c.l.bf16 %v921
  %v960 = vunpack.c.l.bf16 %v922
  %v961 = vunpack.c.l.bf16 %v923
  %v962 = vunpack.c.l.bf16 %v924
  %v963 = vunpack.c.l.bf16 %v930
  %v964 = vadd.f32 %v931, %v963
  %v965 = vadd.f32 %v932, %v963
  %v966 = vadd.f32 %v933, %v963
  %v967 = vadd.f32 %v934, %v963
  %v968 = vadd.f32 %v935, %v963
  %v969 = vadd.f32 %v936, %v963
  %v970 = vadd.f32 %v937, %v963
  %v971 = vadd.f32 %v938, %v963
  %v972 = vadd.f32 %v939, %v963
  %v973 = vadd.f32 %v940, %v963
  %v974 = vadd.f32 %v941, %v963
  %v975 = vadd.f32 %v942, %v963
  %v976 = vadd.f32 %v943, %v963
  %v977 = vadd.f32 %v944, %v963
  %v978 = vadd.f32 %v945, %v963
  %v979 = vadd.f32 %v946, %v963
  %v980 = vadd.f32 %v947, %v963
  %v981 = vadd.f32 %v948, %v963
  %v982 = vadd.f32 %v949, %v963
  %v983 = vadd.f32 %v950, %v963
  %v984 = vadd.f32 %v951, %v963
  %v985 = vadd.f32 %v952, %v963
  %v986 = vadd.f32 %v953, %v963
  %v987 = vadd.f32 %v954, %v963
  %v988 = vadd.f32 %v955, %v963
  %v989 = vadd.f32 %v956, %v963
  %v990 = vadd.f32 %v957, %v963
  %v991 = vadd.f32 %v958, %v963
  %v992 = vadd.f32 %v959, %v963
  %v993 = vadd.f32 %v960, %v963
  %v994 = vadd.f32 %v961, %v963
  %v995 = vadd.f32 %v962, %v963
  %v996 = vpack.c.bf16 %v964, %v964
  %v997 = vpack.c.bf16 %v965, %v965
  %v998 = vpack.c.bf16 %v966, %v966
  %v999 = vpack.c.bf16 %v967, %v967
  %v1000 = vpack.c.bf16 %v968, %v968
  %v1001 = vpack.c.bf16 %v969, %v969
  %v1002 = vpack.c.bf16 %v970, %v970
  %v1003 = vpack.c.bf16 %v971, %v971
  %v1004 = vpack.c.bf16 %v972, %v972
  %v1005 = vpack.c.bf16 %v973, %v973
  %v1006 = vpack.c.bf16 %v974, %v974
  %v1007 = vpack.c.bf16 %v975, %v975
  %v1008 = vpack.c.bf16 %v976, %v976
  %v1009 = vpack.c.bf16 %v977, %v977
  %v1010 = vpack.c.bf16 %v978, %v978
  %v1011 = vpack.c.bf16 %v979, %v979
  %v1012 = vpack.c.bf16 %v980, %v980
  %v1013 = vpack.c.bf16 %v981, %v981
  %v1014 = vpack.c.bf16 %v982, %v982
  %v1015 = vpack.c.bf16 %v983, %v983
  %v1016 = vpack.c.bf16 %v984, %v984
  %v1017 = vpack.c.bf16 %v985, %v985
  %v1018 = vpack.c.bf16 %v986, %v986
  %v1019 = vpack.c.bf16 %v987, %v987
  %v1020 = vpack.c.bf16 %v988, %v988
  %v1021 = vpack.c.bf16 %v989, %v989
  %v1022 = vpack.c.bf16 %v990, %v990
  %v1023 = vpack.c.bf16 %v991, %v991
  %v1024 = vpack.c.bf16 %v992, %v992
  %v1025 = vpack.c.bf16 %v993, %v993
  %v1026 = vpack.c.bf16 %v994, %v994
  %v1027 = vpack.c.bf16 %v995, %v995
  %v1028 = vunpack.c.l.bf16 %v996
  %v1029 = vunpack.c.l.bf16 %v997
  %v1030 = vunpack.c.l.bf16 %v998
  %v1031 = vunpack.c.l.bf16 %v999
  %v1032 = vunpack.c.l.bf16 %v1000
  %v1033 = vunpack.c.l.bf16 %v1001
  %v1034 = vunpack.c.l.bf16 %v1002
  %v1035 = vunpack.c.l.bf16 %v1003
  %v1036 = vunpack.c.l.bf16 %v1004
  %v1037 = vunpack.c.l.bf16 %v1005
  %v1038 = vunpack.c.l.bf16 %v1006
  %v1039 = vunpack.c.l.bf16 %v1007
  %v1040 = vunpack.c.l.bf16 %v1008
  %v1041 = vunpack.c.l.bf16 %v1009
  %v1042 = vunpack.c.l.bf16 %v1010
  %v1043 = vunpack.c.l.bf16 %v1011
  %v1044 = vunpack.c.l.bf16 %v1012
  %v1045 = vunpack.c.l.bf16 %v1013
  %v1046 = vunpack.c.l.bf16 %v1014
  %v1047 = vunpack.c.l.bf16 %v1015
  %v1048 = vunpack.c.l.bf16 %v1016
  %v1049 = vunpack.c.l.bf16 %v1017
  %v1050 = vunpack.c.l.bf16 %v1018
  %v1051 = vunpack.c.l.bf16 %v1019
  %v1052 = vunpack.c.l.bf16 %v1020
  %v1053 = vunpack.c.l.bf16 %v1021
  %v1054 = vunpack.c.l.bf16 %v1022
  %v1055 = vunpack.c.l.bf16 %v1023
  %v1056 = vunpack.c.l.bf16 %v1024
  %v1057 = vunpack.c.l.bf16 %v1025
  %v1058 = vunpack.c.l.bf16 %v1026
  %v1059 = vunpack.c.l.bf16 %v1027
  %v1060 = vmax.f32 %v1028, 0.0
  %v1061 = vmax.f32 %v1029, 0.0
  %v1062 = vmax.f32 %v1030, 0.0
  %v1063 = vmax.f32 %v1031, 0.0
  %v1064 = vmax.f32 %v1032, 0.0
  %v1065 = vmax.f32 %v1033, 0.0
  %v1066 = vmax.f32 %v1034, 0.0
  %v1067 = vmax.f32 %v1035, 0.0
  %v1068 = vmax.f32 %v1036, 0.0
  %v1069 = vmax.f32 %v1037, 0.0
  %v1070 = vmax.f32 %v1038, 0.0
  %v1071 = vmax.f32 %v1039, 0.0
  %v1072 = vmax.f32 %v1040, 0.0
  %v1073 = vmax.f32 %v1041, 0.0
  %v1074 = vmax.f32 %v1042, 0.0
  %v1075 = vmax.f32 %v1043, 0.0
  %v1076 = vmax.f32 %v1044, 0.0
  %v1077 = vmax.f32 %v1045, 0.0
  %v1078 = vmax.f32 %v1046, 0.0
  %v1079 = vmax.f32 %v1047, 0.0
  %v1080 = vmax.f32 %v1048, 0.0
  %v1081 = vmax.f32 %v1049, 0.0
  %v1082 = vmax.f32 %v1050, 0.0
  %v1083 = vmax.f32 %v1051, 0.0
  %v1084 = vmax.f32 %v1052, 0.0
  %v1085 = vmax.f32 %v1053, 0.0
  %v1086 = vmax.f32 %v1054, 0.0
  %v1087 = vmax.f32 %v1055, 0.0
  %v1088 = vmax.f32 %v1056, 0.0
  %v1089 = vmax.f32 %v1057, 0.0
  %v1090 = vmax.f32 %v1058, 0.0
  %v1091 = vmax.f32 %v1059, 0.0
  %v1092 = vpack.c.bf16 %v1061, %v1060
  %v1093 = vpack.c.bf16 %v1063, %v1062
  %v1094 = vpack.c.bf16 %v1065, %v1064
  %v1095 = vpack.c.bf16 %v1067, %v1066
  %v1096 = vpack.c.bf16 %v1069, %v1068
  %v1097 = vpack.c.bf16 %v1071, %v1070
  %v1098 = vpack.c.bf16 %v1073, %v1072
  %v1099 = vpack.c.bf16 %v1075, %v1074
  %v1100 = vpack.c.bf16 %v1077, %v1076
  %v1101 = vpack.c.bf16 %v1079, %v1078
  %v1102 = vpack.c.bf16 %v1081, %v1080
  %v1103 = vpack.c.bf16 %v1083, %v1082
  %v1104 = vpack.c.bf16 %v1085, %v1084
  %v1105 = vpack.c.bf16 %v1087, %v1086
  %v1106 = vpack.c.bf16 %v1089, %v1088
  %v1107 = vpack.c.bf16 %v1091, %v1090
  %v1108 = vld [vmem:[%s5] sm:$0xf]
  %v1109 = vld [vmem:[%s5 + $0x4] sm:$0xf]
  %v1110 = vld [vmem:[%s5 + $0x8] sm:$0xf]
  %v1111 = vld [vmem:[%s5 + $0xc] sm:$0xf]
  %v1112 = vld [vmem:[%s5 + $0x10] sm:$0xf]
  %v1113 = vld [vmem:[%s5 + $0x14] sm:$0xf]
  %v1114 = vld [vmem:[%s5 + $0x18] sm:$0xf]
  %v1115 = vld [vmem:[%s5 + $0x1c] sm:$0xf]
  %v1116 = vld [vmem:[%s5 + $0x20] sm:$0xf]
  %v1117 = vld [vmem:[%s5 + $0x24] sm:$0xf]
  %v1118 = vld [vmem:[%s5 + $0x28] sm:$0xf]
  %v1119 = vld [vmem:[%s5 + $0x2c] sm:$0xf]
  %v1120 = vld [vmem:[%s5 + $0x30] sm:$0xf]
  %v1121 = vld [vmem:[%s5 + $0x34] sm:$0xf]
  %v1122 = vld [vmem:[%s5 + $0x38] sm:$0xf]
  %v1123 = vld [vmem:[%s5 + $0x3c] sm:$0xf]
  %v1140 = vunpack.c.l.b16 %v1108
  %v1141 = vunpack.c.l.b16 %v1109
  %v1142 = vunpack.c.l.b16 %v1110
  %v1143 = vunpack.c.l.b16 %v1111
  %v1144 = vunpack.c.l.b16 %v1112
  %v1145 = vunpack.c.l.b16 %v1113
  %v1146 = vunpack.c.l.b16 %v1114
  %v1147 = vunpack.c.l.b16 %v1115
  %v1148 = vunpack.c.l.b16 %v1116
  %v1149 = vunpack.c.l.b16 %v1117
  %v1150 = vunpack.c.l.b16 %v1118
  %v1151 = vunpack.c.l.b16 %v1119
  %v1152 = vunpack.c.l.b16 %v1120
  %v1153 = vunpack.c.l.b16 %v1121
  %v1154 = vunpack.c.l.b16 %v1122
  %v1155 = vunpack.c.l.b16 %v1123
  %v1156 = vpack.c.b16 %v1141, %v1140
  %v1157 = vpack.c.b16 %v1143, %v1142
  %v1158 = vpack.c.b16 %v1145, %v1144
  %v1159 = vpack.c.b16 %v1147, %v1146
  %v1160 = vpack.c.b16 %v1149, %v1148
  %v1161 = vpack.c.b16 %v1151, %v1150
  %v1162 = vpack.c.b16 %v1153, %v1152
  %v1163 = vpack.c.b16 %v1155, %v1154
  %1172 = vmatpush.bf16.msra.mxu0 %v1163
  %1173 = vmatpush.bf16.msra.mxu0 %v1162
  %1174 = vmatpush.bf16.msra.mxu0 %v1161
  %1175 = vmatpush.bf16.msra.mxu0 %v1160
  %1176 = vmatpush.bf16.msra.mxu0 %v1159
  %1177 = vmatpush.bf16.msra.mxu0 %v1158
  %1178 = vmatpush.bf16.msra.mxu0 %v1157
  %1179 = vmatpush.bf16.msra.mxu0 %v1156
  %1180 = vmatmul.bf16.gmra.mxu0 %v1092
  %v1181 = vpop.f32.mrf.mxu0
  %v1182 = vadd.f32 0.0, %v1181
  %v1183 = vpop.f32.mrf.mxu0
  %v1184 = vadd.f32 0.0, %v1183
  %1185 = vmatmul.bf16.gmra.mxu0 %v1093
  %v1186 = vpop.f32.mrf.mxu0
  %v1187 = vadd.f32 0.0, %v1186
  %v1188 = vpop.f32.mrf.mxu0
  %v1189 = vadd.f32 0.0, %v1188
  %1190 = vmatmul.bf16.gmra.mxu0 %v1094
  %v1191 = vpop.f32.mrf.mxu0
  %v1192 = vadd.f32 0.0, %v1191
  %v1193 = vpop.f32.mrf.mxu0
  %v1194 = vadd.f32 0.0, %v1193
  %1195 = vmatmul.bf16.gmra.mxu0 %v1095
  %v1196 = vpop.f32.mrf.mxu0
  %v1197 = vadd.f32 0.0, %v1196
  %v1198 = vpop.f32.mrf.mxu0
  %v1199 = vadd.f32 0.0, %v1198
  %1200 = vmatmul.bf16.gmra.mxu0 %v1096
  %v1201 = vpop.f32.mrf.mxu0
  %v1202 = vadd.f32 0.0, %v1201
  %v1203 = vpop.f32.mrf.mxu0
  %v1204 = vadd.f32 0.0, %v1203
  %1205 = vmatmul.bf16.gmra.mxu0 %v1097
  %v1206 = vpop.f32.mrf.mxu0
  %v1207 = vadd.f32 0.0, %v1206
  %v1208 = vpop.f32.mrf.mxu0
  %v1209 = vadd.f32 0.0, %v1208
  %1210 = vmatmul.bf16.gmra.mxu0 %v1098
  %v1211 = vpop.f32.mrf.mxu0
  %v1212 = vadd.f32 0.0, %v1211
  %v1213 = vpop.f32.mrf.mxu0
  %v1214 = vadd.f32 0.0, %v1213
  %1215 = vmatmul.bf16.gmra.mxu0 %v1099
  %v1216 = vpop.f32.mrf.mxu0
  %v1217 = vadd.f32 0.0, %v1216
  %v1218 = vpop.f32.mrf.mxu0
  %v1219 = vadd.f32 0.0, %v1218
  %1220 = vmatmul.bf16.gmra.mxu0 %v1100
  %v1221 = vpop.f32.mrf.mxu0
  %v1222 = vadd.f32 0.0, %v1221
  %v1223 = vpop.f32.mrf.mxu0
  %v1224 = vadd.f32 0.0, %v1223
  %1225 = vmatmul.bf16.gmra.mxu0 %v1101
  %v1226 = vpop.f32.mrf.mxu0
  %v1227 = vadd.f32 0.0, %v1226
  %v1228 = vpop.f32.mrf.mxu0
  %v1229 = vadd.f32 0.0, %v1228
  %1230 = vmatmul.bf16.gmra.mxu0 %v1102
  %v1231 = vpop.f32.mrf.mxu0
  %v1232 = vadd.f32 0.0, %v1231
  %v1233 = vpop.f32.mrf.mxu0
  %v1234 = vadd.f32 0.0, %v1233
  %1235 = vmatmul.bf16.gmra.mxu0 %v1103
  %v1236 = vpop.f32.mrf.mxu0
  %v1237 = vadd.f32 0.0, %v1236
  %v1238 = vpop.f32.mrf.mxu0
  %v1239 = vadd.f32 0.0, %v1238
  %1240 = vmatmul.bf16.gmra.mxu0 %v1104
  %v1241 = vpop.f32.mrf.mxu0
  %v1242 = vadd.f32 0.0, %v1241
  %v1243 = vpop.f32.mrf.mxu0
  %v1244 = vadd.f32 0.0, %v1243
  %1245 = vmatmul.bf16.gmra.mxu0 %v1105
  %v1246 = vpop.f32.mrf.mxu0
  %v1247 = vadd.f32 0.0, %v1246
  %v1248 = vpop.f32.mrf.mxu0
  %v1249 = vadd.f32 0.0, %v1248
  %1250 = vmatmul.bf16.gmra.mxu0 %v1106
  %v1251 = vpop.f32.mrf.mxu0
  %v1252 = vadd.f32 0.0, %v1251
  %v1253 = vpop.f32.mrf.mxu0
  %v1254 = vadd.f32 0.0, %v1253
  %1255 = vmatmul.bf16.gmra.mxu0 %v1107
  %v1256 = vpop.f32.mrf.mxu0
  %v1257 = vadd.f32 0.0, %v1256
  %v1258 = vpop.f32.mrf.mxu0
  %v1259 = vadd.f32 0.0, %v1258
  %1260 = vdwg.mxu0
  %v1261 = vld [vmem:[%s6] sm:$0x1]
  %v1263 = vperm.slane %v1261, 0
  %v1265 = vadd.f32 %v1182, %v1263
  %v1266 = vadd.f32 %v1184, %v1263
  %v1267 = vadd.f32 %v1187, %v1263
  %v1268 = vadd.f32 %v1189, %v1263
  %v1269 = vadd.f32 %v1192, %v1263
  %v1270 = vadd.f32 %v1194, %v1263
  %v1271 = vadd.f32 %v1197, %v1263
  %v1272 = vadd.f32 %v1199, %v1263
  %v1273 = vadd.f32 %v1202, %v1263
  %v1274 = vadd.f32 %v1204, %v1263
  %v1275 = vadd.f32 %v1207, %v1263
  %v1276 = vadd.f32 %v1209, %v1263
  %v1277 = vadd.f32 %v1212, %v1263
  %v1278 = vadd.f32 %v1214, %v1263
  %v1279 = vadd.f32 %v1217, %v1263
  %v1280 = vadd.f32 %v1219, %v1263
  %v1281 = vadd.f32 %v1222, %v1263
  %v1282 = vadd.f32 %v1224, %v1263
  %v1283 = vadd.f32 %v1227, %v1263
  %v1284 = vadd.f32 %v1229, %v1263
  %v1285 = vadd.f32 %v1232, %v1263
  %v1286 = vadd.f32 %v1234, %v1263
  %v1287 = vadd.f32 %v1237, %v1263
  %v1288 = vadd.f32 %v1239, %v1263
  %v1289 = vadd.f32 %v1242, %v1263
  %v1290 = vadd.f32 %v1244, %v1263
  %v1291 = vadd.f32 %v1247, %v1263
  %v1292 = vadd.f32 %v1249, %v1263
  %v1293 = vadd.f32 %v1252, %v1263
  %v1294 = vadd.f32 %v1254, %v1263
  %v1295 = vadd.f32 %v1257, %v1263
  %v1296 = vadd.f32 %v1259, %v1263
  %vm1297 = vcmask 31744
  %1298 = vst.msk [vmem:[%s7] sm:$0xff] %vm1297, %v1265
  %1299 = vst.msk [vmem:[%s7 + $0x8] sm:$0xff] %vm1297, %v1266
  %1300 = vst.msk [vmem:[%s7 + $0x10] sm:$0xff] %vm1297, %v1267
  %1301 = vst.msk [vmem:[%s7 + $0x18] sm:$0xff] %vm1297, %v1268
  %1302 = vst.msk [vmem:[%s7 + $0x20] sm:$0xff] %vm1297, %v1269
  %1303 = vst.msk [vmem:[%s7 + $0x28] sm:$0xff] %vm1297, %v1270
  %1304 = vst.msk [vmem:[%s7 + $0x30] sm:$0xff] %vm1297, %v1271
  %1305 = vst.msk [vmem:[%s7 + $0x38] sm:$0xff] %vm1297, %v1272
  %1306 = vst.msk [vmem:[%s7 + $0x40] sm:$0xff] %vm1297, %v1273
  %1307 = vst.msk [vmem:[%s7 + $0x48] sm:$0xff] %vm1297, %v1274
  %1308 = vst.msk [vmem:[%s7 + $0x50] sm:$0xff] %vm1297, %v1275
  %1309 = vst.msk [vmem:[%s7 + $0x58] sm:$0xff] %vm1297, %v1276
  %1310 = vst.msk [vmem:[%s7 + $0x60] sm:$0xff] %vm1297, %v1277
  %1311 = vst.msk [vmem:[%s7 + $0x68] sm:$0xff] %vm1297, %v1278
  %1312 = vst.msk [vmem:[%s7 + $0x70] sm:$0xff] %vm1297, %v1279
  %1313 = vst.msk [vmem:[%s7 + $0x78] sm:$0xff] %vm1297, %v1280
  %1314 = vst.msk [vmem:[%s7 + $0x80] sm:$0xff] %vm1297, %v1281
  %1315 = vst.msk [vmem:[%s7 + $0x88] sm:$0xff] %vm1297, %v1282
  %1316 = vst.msk [vmem:[%s7 + $0x90] sm:$0xff] %vm1297, %v1283
  %1317 = vst.msk [vmem:[%s7 + $0x98] sm:$0xff] %vm1297, %v1284
  %1318 = vst.msk [vmem:[%s7 + $0xa0] sm:$0xff] %vm1297, %v1285
  %1319 = vst.msk [vmem:[%s7 + $0xa8] sm:$0xff] %vm1297, %v1286
  %1320 = vst.msk [vmem:[%s7 + $0xb0] sm:$0xff] %vm1297, %v1287
  %1321 = vst.msk [vmem:[%s7 + $0xb8] sm:$0xff] %vm1297, %v1288
  %1322 = vst.msk [vmem:[%s7 + $0xc0] sm:$0xff] %vm1297, %v1289
  %1323 = vst.msk [vmem:[%s7 + $0xc8] sm:$0xff] %vm1297, %v1290
  %1324 = vst.msk [vmem:[%s7 + $0xd0] sm:$0xff] %vm1297, %v1291
  %1325 = vst.msk [vmem:[%s7 + $0xd8] sm:$0xff] %vm1297, %v1292
  %1326 = vst.msk [vmem:[%s7 + $0xe0] sm:$0xff] %vm1297, %v1293
  %1327 = vst.msk [vmem:[%s7 + $0xe8] sm:$0xff] %vm1297, %v1294
  %1328 = vst.msk [vmem:[%s7 + $0xf0] sm:$0xff] %vm1297, %v1295
  %1329 = vst.msk [vmem:[%s7 + $0xf8] sm:$0xff] %vm1297, %v1296
  // Predicated region
  $region30: #{tpu_custom_call.1} parent=0 // pred_check
    _
  $region31: #{tpu_custom_call.1} parent=0 // pred_check_branch
    %1331 = sbr.rel (0) target = $region33
  $region32: #{tpu_custom_call.1} parent=0 // pred_region
    _
  $region33: #{tpu_custom_call.1} parent=0 // pred_fallthru
    _
  // Predicated region
  $region34: #{tpu_custom_call.1} parent=0 // pred_check
    _
  $region35: #{tpu_custom_call.1} parent=0 // pred_check_branch
    %1333 = sbr.rel (0) target = $region37
  $region36: #{tpu_custom_call.1} parent=0 // pred_region
    _
  $region37: #{tpu_custom_call.1} parent=0 // pred_fallthru
    _

</llo_original>
